<compile_context>
chip_gen: v5e
topology: v5e:2x2
jax: 0.10.0
libtpu: 0.0.40
codegen_flags: <defaults>
</compile_context>

<pallas_src>
import jax
import jax.numpy as jnp
from jax.experimental import pallas as pl
from jax.experimental.pallas import tpu as pltpu

EPS = 1e-5     # sample_factory.utils.utils.EPS
CLIP = 5.0     # RunningMeanStdInPlace default clip


def _obs_normalizer_kernel(x_ref, a_ref, b_ref, o_ref):
    # Hot loop: dtype cast + fused affine + clamp, pure VPU work.
    x = x_ref[...].astype(jnp.float32)
    y = x * a_ref[...] + b_ref[...]          # (TB, D) * (1, D) + (1, D)
    o_ref[...] = jnp.clip(y, -jnp.float32(CLIP), jnp.float32(CLIP)).astype(o_ref.dtype)


def _pick_batch_tile(B, D, in_itemsize, out_itemsize):
    """Pick a batch-tile size that keeps a double-buffered tile a few MiB."""
    target_bytes = 4 << 20                         # per-tile working set target
    per_row = D * (in_itemsize + out_itemsize)
    tb = max(32, (target_bytes // max(per_row, 1)) // 32 * 32)
    tb = min(tb, 1024)                             # cap; bigger gives <1% more
    if B <= tb:
        return B                                   # full-dim block: always legal
    return tb


def observation_normalizer(img_nchw, running_mean, running_var, *,
                           obs_subtract_mean, obs_scale, out_dtype=jnp.float32):
    """img_nchw: (B, C, H, W) any dtype; running_mean/var: (C, H, W) float32."""
    B, C, H, W = img_nchw.shape
    D = C * H * W

    should_sub_mean = abs(obs_subtract_mean) > EPS
    should_scale = abs(obs_scale - 1.0) > EPS

    x2d = img_nchw.reshape(B, D)
    mean = running_mean.reshape(1, D).astype(jnp.float32)
    var = running_var.reshape(1, D).astype(jnp.float32)

    # Fused affine (tiny (1, D) work, hoisted out of the B*D hot loop):
    #   y = ((x - sub) * inv_scale - mean) * inv_std = x * a + b
    inv_std = 1.0 / (jnp.sqrt(var) + jnp.float32(EPS))
    inv_scale = jnp.float32(1.0 / obs_scale) if should_scale else jnp.float32(1.0)
    sub = jnp.float32(obs_subtract_mean) if should_sub_mean else jnp.float32(0.0)
    a = inv_std * inv_scale                       # (1, D)
    b = -(sub * inv_scale + mean) * inv_std       # (1, D)

    out_itemsize = jnp.dtype(out_dtype).itemsize
    TB = _pick_batch_tile(B, D, x2d.dtype.itemsize, out_itemsize)
    grid = (pl.cdiv(B, TB),)

    cost = pl.CostEstimate(
        flops=3 * B * D,
        transcendentals=0,
        bytes_accessed=B * D * x2d.dtype.itemsize + B * D * out_itemsize + 2 * D * 4,
    )

    out2d = pl.pallas_call(
        _obs_normalizer_kernel,
        out_shape=jax.ShapeDtypeStruct((B, D), out_dtype),
        grid=grid,
        in_specs=[
            pl.BlockSpec((TB, D), lambda i: (i, 0)),   # batch-tiled observations
            pl.BlockSpec((1, D), lambda i: (0, 0)),    # a: DMA'd once, VMEM-resident
            pl.BlockSpec((1, D), lambda i: (0, 0)),    # b: DMA'd once, VMEM-resident
        ],
        out_specs=pl.BlockSpec((TB, D), lambda i: (i, 0)),
        compiler_params=pltpu.CompilerParams(
            dimension_semantics=("parallel",)),        # shard batch tiles across TCs (v7x)
        cost_estimate=cost,
    )(x2d, a, b)

    return out2d.reshape(B, C, H, W)


def _reference(img, mean, var, sub_mean, scale):
    x = img.astype(jnp.float32)
    if abs(sub_mean) > EPS:
        x = x - sub_mean
    if abs(scale - 1.0) > EPS:
        x = x * (1.0 / scale)
    y = (x - mean[None]) / (jnp.sqrt(var[None]) + EPS)
    return jnp.clip(y, -CLIP, CLIP)


if __name__ == "__main__":
    # cfg: typical sample_factory image-normalization config
    obs_subtract_mean = 128.0
    obs_scale = 255.0

    key = jax.random.PRNGKey(0)
    k_img, k_mean, k_var, k_img2 = jax.random.split(key, 4)

    C, H, W = 4, 16, 16

    # deterministic "running" statistics (per-observation shape, per_channel=False)
    running_mean = jax.random.normal(k_mean, (C, H, W), dtype=jnp.float32) * 0.1
    running_var = jax.random.uniform(k_var, (C, H, W), dtype=jnp.float32,
                                     minval=0.5, maxval=1.5)

    # --- small case (B=2): single full-batch block ---
    B = 2
    img = jax.random.randint(k_img, (B, C, H, W), 0, 256, dtype=jnp.int32).astype(jnp.uint8)
    out = observation_normalizer(
        img, running_mean, running_var,
        obs_subtract_mean=obs_subtract_mean, obs_scale=obs_scale)
    out = jax.block_until_ready(out)
    ref = _reference(img, running_mean, running_var, obs_subtract_mean, obs_scale)
    assert out.shape == (B, C, H, W) and out.dtype == jnp.float32
    assert jnp.allclose(out, ref, atol=1e-4, rtol=1e-4)

    # --- larger case: exercises the tiled / parallel-grid path with a ragged
    #     last block (1056 = 2*512 + 32 at the auto-picked TB) ---
    B2 = 1056
    img2 = jax.random.randint(k_img2, (B2, C, H, W), 0, 256, dtype=jnp.int32).astype(jnp.uint8)
    out2 = observation_normalizer(
        img2, running_mean, running_var,
        obs_subtract_mean=obs_subtract_mean, obs_scale=obs_scale)
    out2 = jax.block_until_ready(out2)
    ref2 = _reference(img2, running_mean, running_var, obs_subtract_mean, obs_scale)
    assert out2.shape == (B2, C, H, W) and out2.dtype == jnp.float32
    assert jnp.allclose(out2, ref2, atol=1e-4, rtol=1e-4)

    # TODO(synk): training-mode running-stat updates (Welford moment merge in
    # RunningMeanStdInPlace) are stateful in-place buffer updates and are not
    # part of this inference kernel.
    print("KERNEL_OK")
</pallas_src>

<mosaic_0001>
module attributes {stable_mosaic.version = 11 : i64} {
  func.func @_obs_normalizer_kernel(%arg0: i32, %arg1: memref<2x1024xi8, #tpu.memory_space<vmem>>, %arg2: memref<1x1024xf32, #tpu.memory_space<vmem>>, %arg3: memref<1x1024xf32, #tpu.memory_space<vmem>>, %arg4: memref<2x1024xf32, #tpu.memory_space<vmem>>) attributes {dimension_semantics = [#tpu.dimension_semantics<parallel>], iteration_bounds = array<i64: 1>, scalar_prefetch = 0 : i64, scratch_operands = 0 : i64, tpu.core_type = #tpu.core_type<tc>, window_params = [{transform_indices = @transform_0, window_bounds = array<i64: 2, 1024>}, {pipeline_mode = #tpu.pipeline_mode<synchronous>, transform_indices = @transform_1, window_bounds = array<i64: 1, 1024>}, {pipeline_mode = #tpu.pipeline_mode<synchronous>, transform_indices = @transform_2, window_bounds = array<i64: 1, 1024>}, {transform_indices = @transform_3, window_bounds = array<i64: 2, 1024>}]} {
    %c0 = arith.constant 0 : index
    %c0_0 = arith.constant 0 : index
    %0 = vector.load %arg1[%c0, %c0_0] : memref<2x1024xi8, #tpu.memory_space<vmem>>, vector<2x1024xi8>
    %1 = arith.uitofp %0 : vector<2x1024xi8> to vector<2x1024xf32>
    %c0_1 = arith.constant 0 : index
    %c0_2 = arith.constant 0 : index
    %2 = vector.load %arg2[%c0_1, %c0_2] : memref<1x1024xf32, #tpu.memory_space<vmem>>, vector<1x1024xf32>
    %3 = vector.broadcast %2 : vector<1x1024xf32> to vector<2x1024xf32>
    %4 = arith.mulf %1, %3 : vector<2x1024xf32>
    %c0_3 = arith.constant 0 : index
    %c0_4 = arith.constant 0 : index
    %5 = vector.load %arg3[%c0_3, %c0_4] : memref<1x1024xf32, #tpu.memory_space<vmem>>, vector<1x1024xf32>
    %6 = vector.broadcast %5 : vector<1x1024xf32> to vector<2x1024xf32>
    %7 = arith.addf %4, %6 : vector<2x1024xf32>
    %cst = arith.constant 0.000000e+00 : f32
    %cst_5 = arith.constant 5.000000e+00 : f32
    %8 = arith.subf %cst, %cst_5 : f32
    %cst_6 = arith.constant 5.000000e+00 : f32
    %9 = vector.broadcast %8 : f32 to vector<2x1024xf32>
    %10 = arith.maximumf %9, %7 : vector<2x1024xf32>
    %11 = vector.broadcast %cst_6 : f32 to vector<2x1024xf32>
    %12 = arith.minimumf %11, %10 : vector<2x1024xf32>
    %c0_7 = arith.constant 0 : index
    %c0_8 = arith.constant 0 : index
    %13 = vector.load %arg4[%c0_7, %c0_8] : memref<2x1024xf32, #tpu.memory_space<vmem>>, vector<2x1024xf32>
    tpu.vector_store %arg4[%c0_7, %c0_8], %12 {strides = array<i32>} : memref<2x1024xf32, #tpu.memory_space<vmem>>, vector<2x1024xf32>,
    return
  }
  func.func @transform_0(%arg0: i32) -> (i32, i32) {
    %c0_i32 = arith.constant 0 : i32
    %c0_i32_0 = arith.constant 0 : i32
    return %arg0, %c0_i32 : i32, i32
  }
  func.func @transform_1(%arg0: i32) -> (i32, i32) {
    %c0_i32 = arith.constant 0 : i32
    %c0_i32_0 = arith.constant 0 : i32
    %c0_i32_1 = arith.constant 0 : i32
    return %c0_i32, %c0_i32_0 : i32, i32
  }
  func.func @transform_2(%arg0: i32) -> (i32, i32) {
    %c0_i32 = arith.constant 0 : i32
    %c0_i32_0 = arith.constant 0 : i32
    %c0_i32_1 = arith.constant 0 : i32
    return %c0_i32, %c0_i32_0 : i32, i32
  }
  func.func @transform_3(%arg0: i32) -> (i32, i32) {
    %c0_i32 = arith.constant 0 : i32
    %c0_i32_0 = arith.constant 0 : i32
    return %arg0, %c0_i32 : i32, i32
  }
}

</mosaic_0001>

<llo_original>
// kernel: tpu_custom_call.1
$region0: #{tpu_custom_call.1}
  #allocation0 [shape = 'u32[]', space=smem, size = 0x4, offset = 0x4, fixed_abs, tag = 'smem constant byte address 0x4 - core index']
  #allocation1 [shape = 'u32[72,128]{1,0:T(1,128)}', space=vmem, size = 0x9000, scoped, tag = 'internal scratch']
  %s0 = inlined_call_operand.hbm [shape: u8[2,1024], index: 0, kind: input, shape index: {}]
  %s1 = inlined_call_operand.hbm [shape: f32[1,1024], index: 1, kind: input, shape index: {}]
  %s2 = inlined_call_operand.hbm [shape: f32[1,1024], index: 2, kind: input, shape index: {}]
  %s3 = inlined_call_operand.hbm [shape: f32[2,1024], index: 3, kind: output, shape index: {}]
  %s4 = sld [smem:[#allocation0]]
  $region34: #{tpu_custom_call.1} parent=0
    _
  %s6 = ssub.s32 1, %s4
  %s7 = scalar_select 0, %s6, %s4
  $region1: #{tpu_custom_call.1} parent=0
    #allocation2 [shape = 'u8[4096]{0}', space=vmem, size = 0x1000, scoped, tag = 'input window, operand 0, single buffered']
    #allocation3 [shape = 's32[1]{0}', space=sflag, size = 0x4, scoped, tag = 'scoped memory for tpu_custom_call.1']
    #allocation4 [shape = 's32[1]{0}', space=sflag, size = 0x4, scoped, tag = 'scoped memory for tpu_custom_call.1']
    #allocation5 [shape = 'u8[4096]{0}', space=vmem, size = 0x1000, scoped, tag = 'input window, operand 1, single buffered']
    #allocation6 [shape = 's32[1]{0}', space=sflag, size = 0x4, scoped, tag = 'scoped memory for tpu_custom_call.1']
    #allocation7 [shape = 'u8[4096]{0}', space=vmem, size = 0x1000, scoped, tag = 'input window, operand 2, single buffered']
    #allocation8 [shape = 'u8[8192]{0}', space=vmem, size = 0x2000, scoped, tag = 'output window, operand 0, single buffered']
    %8 = vsyncpa [#allocation3], 0
    %9 = vsyncpa [#allocation6], 0
    %10 = vsyncpa [#allocation4], 0
    // Predicated region
    $region2: #{tpu_custom_call.1} parent=1 // pred_check
      _
    $region3: #{tpu_custom_call.1} parent=1 // pred_check_branch
      %12 = sbr.rel (0) target = $region5
    $region4: #{tpu_custom_call.1} parent=1 // pred_region
      %14 = vsyncadd [#allocation3], 0
      %s16 = sshll.u32 %s0, 4
      %s17 = int_to_ptr.hbm [resolvable:$true] %s16
      %s18 = sshll.u32 [#allocation2], 4
      %s19 = int_to_ptr.vmem [resolvable:$true] %s18
      %21 = dma.hbm_to_vmem [thread:$0]  %s17, 128, %s19, [#allocation3]
    $region5: #{tpu_custom_call.1} parent=1 // pred_fallthru
      _
    // Predicated region
    $region6: #{tpu_custom_call.1} parent=1 // pred_check
      _
    $region7: #{tpu_custom_call.1} parent=1 // pred_check_branch
      %23 = sbr.rel (0) target = $region9
    $region8: #{tpu_custom_call.1} parent=1 // pred_region
      %25 = vsyncadd [#allocation6], 0
      %s27 = sshll.u32 %s1, 4
      %s28 = int_to_ptr.hbm [resolvable:$true] %s27
      %s29 = sshll.u32 [#allocation5], 4
      %s30 = int_to_ptr.vmem [resolvable:$true] %s29
      %32 = dma.hbm_to_vmem [thread:$0]  %s28, 128, %s30, [#allocation6]
    $region9: #{tpu_custom_call.1} parent=1 // pred_fallthru
      _
    // Predicated region
    $region10: #{tpu_custom_call.1} parent=1 // pred_check
      _
    $region11: #{tpu_custom_call.1} parent=1 // pred_check_branch
      %34 = sbr.rel (0) target = $region13
    $region12: #{tpu_custom_call.1} parent=1 // pred_region
      %36 = vsyncadd [#allocation6], 0
      %s38 = sshll.u32 %s2, 4
      %s39 = int_to_ptr.hbm [resolvable:$true] %s38
      %s40 = sshll.u32 [#allocation7], 4
      %s41 = int_to_ptr.vmem [resolvable:$true] %s40
      %43 = dma.hbm_to_vmem [thread:$0]  %s39, 128, %s41, [#allocation6]
    $region13: #{tpu_custom_call.1} parent=1 // pred_fallthru
      _
    // Predicated region
    $region14: #{tpu_custom_call.1} parent=1 // pred_check
      _
    $region15: #{tpu_custom_call.1} parent=1 // pred_check_branch
      %45 = sbr.rel (0) target = $region17
    $region16: #{tpu_custom_call.1} parent=1 // pred_region
      %47 = dma.done [#allocation3], 128
    $region17: #{tpu_custom_call.1} parent=1 // pred_fallthru
      _
    // Predicated region
    $region18: #{tpu_custom_call.1} parent=1 // pred_check
      _
    $region19: #{tpu_custom_call.1} parent=1 // pred_check_branch
      %49 = sbr.rel (0) target = $region21
    $region20: #{tpu_custom_call.1} parent=1 // pred_region
      %51 = dma.done [#allocation6], 128
    $region21: #{tpu_custom_call.1} parent=1 // pred_fallthru
      _
    // Predicated region
    $region22: #{tpu_custom_call.1} parent=1 // pred_check
      _
    $region23: #{tpu_custom_call.1} parent=1 // pred_check_branch
      %53 = sbr.rel (0) target = $region25
    $region24: #{tpu_custom_call.1} parent=1 // pred_region
      %55 = dma.done [#allocation6], 128
    $region25: #{tpu_custom_call.1} parent=1 // pred_fallthru
      _
    %v56 = vld [vmem:[#allocation2] sm:$0xff]
    %v57 = vunpack.c.0.s8 %v56
    %v58 = vunpack.c.1.s8 %v56
    %v59 = vunpack.c.2.s8 %v56
    %v60 = vunpack.c.3.s8 %v56
    %v61 = vand.u32 %v57, 255
    %v62 = vand.u32 %v58, 255
    %v63 = vand.u32 %v59, 255
    %v64 = vand.u32 %v60, 255
    %v65 = vcvt.s32.f32 %v61
    %v66 = vcvt.s32.f32 %v62
    %v67 = vcvt.s32.f32 %v63
    %v68 = vcvt.s32.f32 %v64
    %v69 = vld [vmem:[#allocation5] sm:$0xff]
    %v71 = vperm.slane %v69, 0
    %v72 = vperm.slane %v69, 1
    %v73 = vperm.slane %v69, 2
    %v74 = vperm.slane %v69, 3
    %v75 = vperm.slane %v69, 4
    %v76 = vperm.slane %v69, 5
    %v77 = vperm.slane %v69, 6
    %v78 = vperm.slane %v69, 7
    %v79 = vrot.slane %v72, 4
    %v80 = vrot.slane %v74, 4
    %v81 = vrot.slane %v76, 4
    %v82 = vrot.slane %v78, 4
    %vm83 = vcmask 1043456
    %v84 = vsel %vm83, %v71, %v79
    %v85 = vsel %vm83, %v73, %v80
    %v86 = vsel %vm83, %v75, %v81
    %v87 = vsel %vm83, %v77, %v82
    %v92 = vmul.f32 %v65, %v84
    %v93 = vmul.f32 %v66, %v85
    %v94 = vmul.f32 %v67, %v86
    %v95 = vmul.f32 %v68, %v87
    %v96 = vld [vmem:[#allocation7] sm:$0xff]
    %v98 = vperm.slane %v96, 0
    %v99 = vperm.slane %v96, 1
    %v100 = vperm.slane %v96, 2
    %v101 = vperm.slane %v96, 3
    %v102 = vperm.slane %v96, 4
    %v103 = vperm.slane %v96, 5
    %v104 = vperm.slane %v96, 6
    %v105 = vperm.slane %v96, 7
    %v106 = vrot.slane %v99, 4
    %v107 = vrot.slane %v101, 4
    %v108 = vrot.slane %v103, 4
    %v109 = vrot.slane %v105, 4
    %v110 = vsel %vm83, %v98, %v106
    %v111 = vsel %vm83, %v100, %v107
    %v112 = vsel %vm83, %v102, %v108
    %v113 = vsel %vm83, %v104, %v109
    %v118 = vadd.f32 %v92, %v110
    %v119 = vadd.f32 %v93, %v111
    %v120 = vadd.f32 %v94, %v112
    %v121 = vadd.f32 %v95, %v113
    %v122 = vmax.f32 %v118, -5.0
    %v123 = vmax.f32 %v119, -5.0
    %v124 = vmax.f32 %v120, -5.0
    %v125 = vmax.f32 %v121, -5.0
    %v126 = vmin.f32 %v122, 5.0
    %v127 = vmin.f32 %v123, 5.0
    %v128 = vmin.f32 %v124, 5.0
    %v129 = vmin.f32 %v125, 5.0
    %v134 = vrot.slane %v126, 2
    %v135 = vrot.slane %v127, 4
    %v136 = vrot.slane %v127, 6
    %v137 = vrot.slane %v128, 2
    %v138 = vrot.slane %v129, 4
    %v139 = vrot.slane %v129, 6
    %vm140 = vcmask 1041408
    %v141 = vsel %vm140, %v126, %v134
    %vm142 = vcmask 1045508
    %v143 = vsel %vm142, %v135, %v136
    %v144 = vsel %vm83, %v141, %v143
    %v145 = vsel %vm140, %v128, %v137
    %v146 = vsel %vm142, %v138, %v139
    %v147 = vsel %vm83, %v145, %v146
    %150 = vst [vmem:[#allocation8] sm:$0xff] %v144
    %151 = vst [vmem:[#allocation8 + $0x8] sm:$0xff] %v147
    // Predicated region
    $region26: #{tpu_custom_call.1} parent=1 // pred_check
      _
    $region27: #{tpu_custom_call.1} parent=1 // pred_check_branch
      %153 = sbr.rel (0) target = $region29
    $region28: #{tpu_custom_call.1} parent=1 // pred_region
      %155 = vsyncadd [#allocation4], 0
      %s157 = sshll.u32 [#allocation8], 4
      %s158 = int_to_ptr.vmem [resolvable:$true] %s157
      %s159 = sshll.u32 %s3, 4
      %s160 = int_to_ptr.hbm [resolvable:$true] %s159
      %162 = dma.vmem_to_hbm [thread:$0]  %s158, 256, %s160, [#allocation4]
    $region29: #{tpu_custom_call.1} parent=1 // pred_fallthru
      _
    // Predicated region
    $region30: #{tpu_custom_call.1} parent=1 // pred_check
      _
    $region31: #{tpu_custom_call.1} parent=1 // pred_check_branch
      %164 = sbr.rel (0) target = $region33
    $region32: #{tpu_custom_call.1} parent=1 // pred_region
      %166 = dma.done [#allocation4], 256
    $region33: #{tpu_custom_call.1} parent=1 // pred_fallthru
      _
    %167 = vsyncpa [#allocation3], 1
    %168 = vsyncpa [#allocation6], 1
    %169 = vsyncpa [#allocation4], 1

</llo_original>
